<compile_context>
chip_gen: v6e
topology: v6e:2x2x1
jax: 0.10.0
libtpu: 0.0.40
codegen_flags: <defaults>
</compile_context>

<pallas_src>
import functools

import numpy as np

import jax
import jax.numpy as jnp
from jax.experimental import pallas as pl
from jax.experimental.pallas import tpu as pltpu


# ---------------------------------------------------------------------------
# Weight folding: 3x3 stride-2 transposed-conv taps -> one (4*Cin, 4*Cout) matrix
# ---------------------------------------------------------------------------
def _fold_transposed_conv_weight(w):
    """Fold the transposed-conv taps into a single matmul weight.

    Row blocks  s = 2*dy + dx  select the shifted input x[m+dy, n+dx].
    Column blocks t = 2*p + q  select the output phase  out[2m+p, 2n+q].
    With stride=2, padding=1: oy = 2*iy - 1 + ky, so
      p == 0 -> (ky=1, dy=0);   p == 1 -> (ky=0, dy=1) or (ky=2, dy=0)
    (and the same for q / kx).  Exactly 9 (s, t) blocks are nonzero — the 9 taps.
    Note p==0 columns only have nonzero rows with dy==0 (s in {0,1}).
    """
    Cin, Cout = w.shape[2], w.shape[3]

    def tap(parity, shift):
        if parity == 0:
            return 1 if shift == 0 else None
        return 2 if shift == 0 else 0

    w_all = jnp.zeros((4 * Cin, 4 * Cout), w.dtype)
    for dy in (0, 1):
        for dx in (0, 1):
            s = 2 * dy + dx
            for p in (0, 1):
                for q in (0, 1):
                    t = 2 * p + q
                    ky, kx = tap(p, dy), tap(q, dx)
                    if ky is None or kx is None:
                        continue
                    w_all = w_all.at[s * Cin:(s + 1) * Cin,
                                     t * Cout:(t + 1) * Cout].set(w[ky, kx])
    return w_all


# ---------------------------------------------------------------------------
# Fused kernel: transposed conv (two matmuls) + folded BN bias + ReLU
# ---------------------------------------------------------------------------
def _decode_conv_kernel(x_ref, halo_ref, w_even_ref, w_odd_ref, bias_ref,
                        out_ref, *, n_row_tiles):
    _, tile_h, W, Cin = x_ref.shape
    half = w_odd_ref.shape[-1]        # 2 * Cout, column order (q, c)
    r = pl.program_id(1)

    # Cast to bf16 right at the load so every shifted slab is built in bf16.
    x = x_ref[0].astype(jnp.bfloat16)           # (tile_h, W, Cin) : x[m,   n]
    halo = halo_ref[0].astype(jnp.bfloat16)     # (1, W, Cin) image row below tile
    # The row below the *last* row tile lies outside the image -> zero it.
    halo = halo * (r < n_row_tiles - 1).astype(jnp.bfloat16)

    zero_col = jnp.zeros((tile_h, 1, Cin), jnp.bfloat16)
    x_dn = jnp.concatenate([x[1:], halo], axis=0)              # x[m+1, n]
    x01 = jnp.concatenate([x[:, 1:], zero_col], axis=1)        # x[m,   n+1]
    x11 = jnp.concatenate([x_dn[:, 1:], zero_col], axis=1)     # x[m+1, n+1]

    m_rows = tile_h * W
    slab_even = jnp.concatenate(                                # (M, 2*Cin)
        [x.reshape(m_rows, Cin), x01.reshape(m_rows, Cin)], axis=-1)
    slab_odd = jnp.concatenate(                                 # (M, 4*Cin)
        [slab_even, x_dn.reshape(m_rows, Cin), x11.reshape(m_rows, Cin)],
        axis=-1)

    # BN scale (and conv bias) are folded into the bf16 weights in the wrapper;
    # only bias-add + ReLU run on the VPU here.  Accumulation in f32 on the MXU.
    bias = bias_ref[...]                                        # (1, 2*Cout) f32
    acc_even = jnp.dot(slab_even, w_even_ref[...],
                       preferred_element_type=jnp.float32)      # (M, 2*Cout)
    acc_odd = jnp.dot(slab_odd, w_odd_ref[...],
                      preferred_element_type=jnp.float32)       # (M, 2*Cout)

    y_even = jnp.maximum(acc_even + bias, 0.0)                  # even output rows
    y_odd = jnp.maximum(acc_odd + bias, 0.0)                    # odd output rows

    # (M, 2*Cout) -> (tile_h, W, 2*Cout) keeps the minor dim: layout-trivial.
    out_ref[0, :, 0] = y_even.reshape(tile_h, W, half).astype(out_ref.dtype)
    out_ref[0, :, 1] = y_odd.reshape(tile_h, W, half).astype(out_ref.dtype)


# ---------------------------------------------------------------------------
# Generation-aware VMEM budget + tile selection
# ---------------------------------------------------------------------------
def _vmem_limit_bytes():
    cap = 64 * 1024 * 1024          # conservative fallback: v7x per-TC VMEM
    try:
        info = pltpu.get_tpu_info()
        cap = int(getattr(info, "vmem_capacity_bytes", cap))
    except Exception:
        pass
    # Leave headroom for compiler-internal scratch; never request physical max.
    return min(cap * 3 // 4, 100 * 1024 * 1024)


def _pick_tile_h(H, W, Cin, Cout, x_bytes, out_bytes, budget_bytes):
    """Largest divisor of H whose per-step working set fits the VMEM budget."""
    w_bytes = 2 * (2 * Cin + 4 * Cin) * 2 * Cout * 2   # bf16 w_even+w_odd, 2x bufs

    def step_bytes(t):
        m = t * W
        in_tile = 2 * (m + W) * Cin * x_bytes          # main + halo, double-buffered
        out_tile = 2 * m * 4 * Cout * out_bytes        # (t,2,W,2Cout), double-buffered
        slabs = m * 6 * Cin * 2                        # bf16 slab_even + slab_odd
        acc = m * 2 * Cout * 4 * 4                     # acc/y even+odd in f32
        return w_bytes + in_tile + out_tile + slabs + acc

    best = None
    for t in range(1, H + 1):
        if H % t == 0 and step_bytes(t) <= budget_bytes:
            best = t
    return best if best is not None else 1


# ---------------------------------------------------------------------------
# Wrapper
# ---------------------------------------------------------------------------
def decode_conv_block(x, w, scale, bias, *, tile_h=None, out_dtype=None):
    """Fused ConvTranspose2d(3x3, s=2, p=1, op=1) + folded BN + ReLU.

    x:     (B, H, W, Cin) NHWC
    w:     (3, 3, Cin, Cout), w[ky, kx, ci, co] == torch weight[ci, co, ky, kx]
    scale: (Cout,) folded BN scale  = gamma / sqrt(var + eps)
    bias:  (Cout,) folded BN bias   = beta + scale * (conv_bias - mean)
    Returns (B, 2H, 2W, Cout) NHWC.  out_dtype=jnp.bfloat16 halves HBM output
    traffic on memory-bound chips (v6e) when the consumer tolerates bf16.
    """
    B, H, W, Cin = x.shape
    Cout = w.shape[-1]
    out_dtype = x.dtype if out_dtype is None else out_dtype

    vmem_limit = _vmem_limit_bytes()
    if tile_h is None:
        tile_h = _pick_tile_h(H, W, Cin, Cout,
                              jnp.dtype(x.dtype).itemsize,
                              jnp.dtype(out_dtype).itemsize,
                              vmem_limit // 2)
    assert H % tile_h == 0, (H, tile_h)
    n_row_tiles = H // tile_h

    # Fold taps -> (4Cin, 4Cout), fold BN scale into columns (f32), then split
    # into the even-phase (rows s in {0,1}) and odd-phase halves and pre-cast
    # to bf16 so no per-step weight cast / scale multiply happens in-kernel.
    w_all = _fold_transposed_conv_weight(w.astype(jnp.float32))
    scale_cols = jnp.tile(scale.astype(jnp.float32), (4,))            # (4Cout,)
    w_all = w_all * scale_cols[None, :]
    w_even = w_all[:2 * Cin, :2 * Cout].astype(jnp.bfloat16)          # (2Cin, 2Cout)
    w_odd = w_all[:, 2 * Cout:].astype(jnp.bfloat16)                  # (4Cin, 2Cout)
    bias2 = jnp.tile(bias.astype(jnp.float32), (2,)).reshape(1, 2 * Cout)

    kernel = functools.partial(_decode_conv_kernel, n_row_tiles=n_row_tiles)

    x_bytes = B * H * W * Cin * jnp.dtype(x.dtype).itemsize
    out_bytes = B * 4 * H * W * Cout * jnp.dtype(out_dtype).itemsize
    w_bytes_hbm = (w_even.size + w_odd.size) * 2 + bias2.size * 4
    cost = pl.CostEstimate(flops=2 * 9 * B * H * W * Cin * Cout,
                           transcendentals=0,
                           bytes_accessed=x_bytes + out_bytes + w_bytes_hbm)

    out = pl.pallas_call(
        kernel,
        out_shape=jax.ShapeDtypeStruct((B, H, 2, W, 2 * Cout), out_dtype),
        grid=(B, n_row_tiles),
        in_specs=[
            # main row tile
            pl.BlockSpec((1, tile_h, W, Cin), lambda b, r: (b, r, 0, 0)),
            # halo: the single image row below this tile (same array, tiny block);
            # clamped for the last tile and masked to zero in-kernel.
            pl.BlockSpec((1, 1, W, Cin),
                         lambda b, r: (b, jnp.minimum((r + 1) * tile_h, H - 1), 0, 0)),
            pl.BlockSpec((2 * Cin, 2 * Cout), lambda b, r: (0, 0)),   # even-phase W
            pl.BlockSpec((4 * Cin, 2 * Cout), lambda b, r: (0, 0)),   # odd-phase W
            pl.BlockSpec((1, 2 * Cout), lambda b, r: (0, 0)),         # BN bias
        ],
        out_specs=pl.BlockSpec((1, tile_h, 2, W, 2 * Cout),
                               lambda b, r: (b, r, 0, 0, 0)),
        compiler_params=pltpu.CompilerParams(
            dimension_semantics=("parallel", "parallel"),
            vmem_limit_bytes=vmem_limit),
        cost_estimate=cost,
    )(x, x, w_even, w_odd, bias2)

    # (B, H, 2, W, 2*Cout) row-major is bit-identical to (B, 2H, 2W, Cout):
    # this reshape is pure metadata (no data movement).
    return out.reshape(B, 2 * H, 2 * W, Cout)


# ---------------------------------------------------------------------------
# Deterministic synthetic parameters (conv weight + bias, eval-mode BN folded)
# ---------------------------------------------------------------------------
def make_decode_conv_params(key, in_ch, out_ch):
    k1, k2, k3, k4, k5, k6 = jax.random.split(key, 6)
    w = (jax.random.normal(k1, (3, 3, in_ch, out_ch), jnp.float32)
         * (1.0 / jnp.sqrt(9.0 * in_ch)))
    conv_b = 0.1 * jax.random.normal(k2, (out_ch,), jnp.float32)
    gamma = 1.0 + 0.1 * jax.random.normal(k3, (out_ch,), jnp.float32)
    beta = 0.1 * jax.random.normal(k4, (out_ch,), jnp.float32)
    run_mean = 0.1 * jax.random.normal(k5, (out_ch,), jnp.float32)
    run_var = 0.5 + jnp.abs(jax.random.normal(k6, (out_ch,), jnp.float32))
    eps = 1e-5
    scale = gamma / jnp.sqrt(run_var + eps)
    bias = beta + scale * (conv_b - run_mean)
    return w, scale, bias


# ---------------------------------------------------------------------------
# Pure NumPy reference (scatter form of ConvTranspose2d) for validation
# ---------------------------------------------------------------------------
def reference_decode_conv_block(x, w, scale, bias):
    x = np.asarray(x, np.float64)
    w = np.asarray(w, np.float64)
    scale = np.asarray(scale, np.float64).reshape(-1)
    bias = np.asarray(bias, np.float64).reshape(-1)
    B, H, W, _ = x.shape
    Cout = w.shape[-1]
    Ho, Wo = 2 * H, 2 * W
    # oy = 2*iy - 1 + ky ; ox = 2*ix - 1 + kx ; 1-pixel guard border absorbs -1.
    out = np.zeros((B, Ho + 2, Wo + 2, Cout), np.float64)
    for ky in range(3):
        for kx in range(3):
            contrib = np.einsum("bhwi,io->bhwo", x, w[ky, kx])
            out[:, ky:ky + 2 * H:2, kx:kx + 2 * W:2, :] += contrib
    out = out[:, 1:1 + Ho, 1:1 + Wo, :]
    out = out * scale + bias
    return np.maximum(out, 0.0)


if __name__ == "__main__":
    key = jax.random.PRNGKey(0)
    k_x, k_p = jax.random.split(key)

    B, H, W = 2, 16, 16
    in_ch, out_ch = 4, 8

    # PyTorch input would be NCHW (2, 4, 16, 16); NHWC equivalent used here.
    x = jax.random.normal(k_x, (B, H, W, in_ch), jnp.float32)
    w, scale, bias = make_decode_conv_params(k_p, in_ch, out_ch)

    ref = reference_decode_conv_block(x, w, scale, bias)

    # tile_h=8 -> grid (B, 2): exercises multi-row-tile pipelining and the
    # inter-tile halo path on this small demo shape.
    fwd_tiled = jax.jit(functools.partial(decode_conv_block, tile_h=8))
    out = jax.block_until_ready(fwd_tiled(x, w, scale, bias))
    assert out.shape == (B, 2 * H, 2 * W, out_ch), out.shape
    np.testing.assert_allclose(np.asarray(out, dtype=np.float64), ref,
                               rtol=5e-2, atol=5e-2)

    # Auto (VMEM-derived) tile selection path: single row tile at this size.
    fwd_auto = jax.jit(decode_conv_block)
    out_auto = jax.block_until_ready(fwd_auto(x, w, scale, bias))
    np.testing.assert_allclose(np.asarray(out_auto, dtype=np.float64), ref,
                               rtol=5e-2, atol=5e-2)

    print("KERNEL_OK")
</pallas_src>

<mosaic_0001>
module attributes {stable_mosaic.version = 11 : i64} {
  func.func @_decode_conv_kernel(%arg0: i32, %arg1: i32, %arg2: memref<1x8x16x4xf32, #tpu.memory_space<vmem>>, %arg3: memref<1x1x16x4xf32, #tpu.memory_space<vmem>>, %arg4: memref<8x16xbf16, #tpu.memory_space<vmem>>, %arg5: memref<16x16xbf16, #tpu.memory_space<vmem>>, %arg6: memref<1x16xf32, #tpu.memory_space<vmem>>, %arg7: memref<1x8x2x16x16xf32, #tpu.memory_space<vmem>>) attributes {dimension_semantics = [#tpu.dimension_semantics<parallel>, #tpu.dimension_semantics<parallel>], iteration_bounds = array<i64: 2, 2>, scalar_prefetch = 0 : i64, scratch_operands = 0 : i64, tpu.core_type = #tpu.core_type<tc>, window_params = [{transform_indices = @transform_0, window_bounds = array<i64: 1, 8, 16, 4>}, {transform_indices = @transform_1, window_bounds = array<i64: 1, 1, 16, 4>}, {pipeline_mode = #tpu.pipeline_mode<synchronous>, transform_indices = @transform_2, window_bounds = array<i64: 8, 16>}, {pipeline_mode = #tpu.pipeline_mode<synchronous>, transform_indices = @transform_3, window_bounds = array<i64: 16, 16>}, {pipeline_mode = #tpu.pipeline_mode<synchronous>, transform_indices = @transform_4, window_bounds = array<i64: 1, 16>}, {transform_indices = @transform_5, window_bounds = array<i64: 1, 8, 2, 16, 16>}]} {
    %c0 = arith.constant 0 : index
    %c0_0 = arith.constant 0 : index
    %c0_1 = arith.constant 0 : index
    %c0_2 = arith.constant 0 : index
    %0 = vector.load %arg2[%c0, %c0_0, %c0_1, %c0_2] : memref<1x8x16x4xf32, #tpu.memory_space<vmem>>, vector<1x8x16x4xf32>
    %1 = vector.shape_cast %0 : vector<1x8x16x4xf32> to vector<8x16x4xf32>
    %2 = arith.truncf %1 : vector<8x16x4xf32> to vector<8x16x4xbf16>
    %c0_3 = arith.constant 0 : index
    %c0_4 = arith.constant 0 : index
    %c0_5 = arith.constant 0 : index
    %c0_6 = arith.constant 0 : index
    %3 = vector.load %arg3[%c0_3, %c0_4, %c0_5, %c0_6] : memref<1x1x16x4xf32, #tpu.memory_space<vmem>>, vector<1x1x16x4xf32>
    %4 = vector.shape_cast %3 : vector<1x1x16x4xf32> to vector<1x16x4xf32>
    %5 = arith.truncf %4 : vector<1x16x4xf32> to vector<1x16x4xbf16>
    %c1_i32 = arith.constant 1 : i32
    %6 = arith.cmpi slt, %arg1, %c1_i32 : i32
    %7 = arith.extui %6 : i1 to i32
    %8 = arith.sitofp %7 : i32 to f32
    %9 = arith.truncf %8 : f32 to bf16
    %10 = vector.broadcast %9 : bf16 to vector<1x16x4xbf16>
    %11 = arith.mulf %5, %10 : vector<1x16x4xbf16>
    %cst = arith.constant 0.000000e+00 : bf16
    %12 = vector.broadcast %cst : bf16 to vector<8x1x4xbf16>
    %13 = vector.extract_strided_slice %2 {offsets = [1, 0, 0], sizes = [7, 16, 4], strides = [1, 1, 1]} : vector<8x16x4xbf16> to vector<7x16x4xbf16>
    %14 = tpu.concatenate %13, %11 in 0 : vector<7x16x4xbf16>, vector<1x16x4xbf16> -> vector<8x16x4xbf16>
    %15 = vector.extract_strided_slice %2 {offsets = [0, 1, 0], sizes = [8, 15, 4], strides = [1, 1, 1]} : vector<8x16x4xbf16> to vector<8x15x4xbf16>
    %16 = tpu.concatenate %15, %12 in 1 : vector<8x15x4xbf16>, vector<8x1x4xbf16> -> vector<8x16x4xbf16>
    %17 = vector.extract_strided_slice %14 {offsets = [0, 1, 0], sizes = [8, 15, 4], strides = [1, 1, 1]} : vector<8x16x4xbf16> to vector<8x15x4xbf16>
    %18 = tpu.concatenate %17, %12 in 1 : vector<8x15x4xbf16>, vector<8x1x4xbf16> -> vector<8x16x4xbf16>
    %19 = vector.shape_cast %2 : vector<8x16x4xbf16> to vector<128x4xbf16>
    %20 = vector.shape_cast %16 : vector<8x16x4xbf16> to vector<128x4xbf16>
    %21 = tpu.concatenate %19, %20 in 1 : vector<128x4xbf16>, vector<128x4xbf16> -> vector<128x8xbf16>
    %22 = vector.shape_cast %14 : vector<8x16x4xbf16> to vector<128x4xbf16>
    %23 = vector.shape_cast %18 : vector<8x16x4xbf16> to vector<128x4xbf16>
    %24 = tpu.concatenate %21, %22, %23 in 1 : vector<128x8xbf16>, vector<128x4xbf16>, vector<128x4xbf16> -> vector<128x16xbf16>
    %c0_7 = arith.constant 0 : index
    %c0_8 = arith.constant 0 : index
    %25 = vector.load %arg6[%c0_7, %c0_8] : memref<1x16xf32, #tpu.memory_space<vmem>>, vector<1x16xf32>
    %c0_9 = arith.constant 0 : index
    %c0_10 = arith.constant 0 : index
    %26 = vector.load %arg4[%c0_9, %c0_10] : memref<8x16xbf16, #tpu.memory_space<vmem>>, vector<8x16xbf16>
    %cst_11 = arith.constant dense<0.000000e+00> : vector<128x16xf32>
    %27 = tpu.matmul %21, %26, %cst_11 {dimension_numbers = #tpu.dot_dimension_numbers<[1], [0], [0], [1], [0, 0, 1, 1], [], []>} : vector<128x8xbf16>, vector<8x16xbf16>, vector<128x16xf32> -> vector<128x16xf32>
    %c0_12 = arith.constant 0 : index
    %c0_13 = arith.constant 0 : index
    %28 = vector.load %arg5[%c0_12, %c0_13] : memref<16x16xbf16, #tpu.memory_space<vmem>>, vector<16x16xbf16>
    %cst_14 = arith.constant dense<0.000000e+00> : vector<128x16xf32>
    %29 = tpu.matmul %24, %28, %cst_14 {dimension_numbers = #tpu.dot_dimension_numbers<[1], [0], [0], [1], [0, 0, 1, 1], [], []>} : vector<128x16xbf16>, vector<16x16xbf16>, vector<128x16xf32> -> vector<128x16xf32>
    %30 = vector.broadcast %25 : vector<1x16xf32> to vector<128x16xf32>
    %31 = arith.addf %27, %30 : vector<128x16xf32>
    %cst_15 = arith.constant 0.000000e+00 : f32
    %32 = vector.broadcast %cst_15 : f32 to vector<128x16xf32>
    %33 = arith.maximumf %31, %32 : vector<128x16xf32>
    %34 = vector.broadcast %25 : vector<1x16xf32> to vector<128x16xf32>
    %35 = arith.addf %29, %34 : vector<128x16xf32>
    %cst_16 = arith.constant 0.000000e+00 : f32
    %36 = vector.broadcast %cst_16 : f32 to vector<128x16xf32>
    %37 = arith.maximumf %35, %36 : vector<128x16xf32>
    %38 = vector.shape_cast %33 : vector<128x16xf32> to vector<8x16x16xf32>
    %c0_17 = arith.constant 0 : index
    %c0_18 = arith.constant 0 : index
    %c0_19 = arith.constant 0 : index
    %c0_20 = arith.constant 0 : index
    %c0_21 = arith.constant 0 : index
    %39 = vector.load %arg7[%c0_17, %c0_18, %c0_19, %c0_20, %c0_21] : memref<1x8x2x16x16xf32, #tpu.memory_space<vmem>>, vector<1x8x1x16x16xf32>
    %40 = vector.shape_cast %39 : vector<1x8x1x16x16xf32> to vector<8x16x16xf32>
    %41 = vector.shape_cast %38 : vector<8x16x16xf32> to vector<1x8x1x16x16xf32>
    tpu.vector_store %arg7[%c0_17, %c0_18, %c0_19, %c0_20, %c0_21], %41 {strides = array<i32>} : memref<1x8x2x16x16xf32, #tpu.memory_space<vmem>>, vector<1x8x1x16x16xf32>,
    %42 = vector.shape_cast %37 : vector<128x16xf32> to vector<8x16x16xf32>
    %c0_22 = arith.constant 0 : index
    %c0_23 = arith.constant 0 : index
    %c1 = arith.constant 1 : index
    %c0_24 = arith.constant 0 : index
    %c0_25 = arith.constant 0 : index
    %43 = vector.load %arg7[%c0_22, %c0_23, %c1, %c0_24, %c0_25] : memref<1x8x2x16x16xf32, #tpu.memory_space<vmem>>, vector<1x8x1x16x16xf32>
    %44 = vector.shape_cast %43 : vector<1x8x1x16x16xf32> to vector<8x16x16xf32>
    %45 = vector.shape_cast %42 : vector<8x16x16xf32> to vector<1x8x1x16x16xf32>
    tpu.vector_store %arg7[%c0_22, %c0_23, %c1, %c0_24, %c0_25], %45 {strides = array<i32>} : memref<1x8x2x16x16xf32, #tpu.memory_space<vmem>>, vector<1x8x1x16x16xf32>,
    return
  }
  func.func @transform_0(%arg0: i32, %arg1: i32) -> (i32, i32, i32, i32) {
    %c0_i32 = arith.constant 0 : i32
    %c0_i32_0 = arith.constant 0 : i32
    %c0_i32_1 = arith.constant 0 : i32
    return %arg0, %arg1, %c0_i32, %c0_i32_0 : i32, i32, i32, i32
  }
  func.func @transform_1(%arg0: i32, %arg1: i32) -> (i32, i32, i32, i32) {
    %c1_i32 = arith.constant 1 : i32
    %0 = arith.addi %arg1, %c1_i32 : i32
    %c8_i32 = arith.constant 8 : i32
    %1 = arith.muli %0, %c8_i32 : i32
    %c15_i32 = arith.constant 15 : i32
    %2 = arith.minsi %1, %c15_i32 : i32
    %c0_i32 = arith.constant 0 : i32
    %c0_i32_0 = arith.constant 0 : i32
    %c0_i32_1 = arith.constant 0 : i32
    return %arg0, %2, %c0_i32, %c0_i32_0 : i32, i32, i32, i32
  }
  func.func @transform_2(%arg0: i32, %arg1: i32) -> (i32, i32) {
    %c0_i32 = arith.constant 0 : i32
    %c0_i32_0 = arith.constant 0 : i32
    %c0_i32_1 = arith.constant 0 : i32
    return %c0_i32, %c0_i32_0 : i32, i32
  }
  func.func @transform_3(%arg0: i32, %arg1: i32) -> (i32, i32) {
    %c0_i32 = arith.constant 0 : i32
    %c0_i32_0 = arith.constant 0 : i32
    %c0_i32_1 = arith.constant 0 : i32
    return %c0_i32, %c0_i32_0 : i32, i32
  }
  func.func @transform_4(%arg0: i32, %arg1: i32) -> (i32, i32) {
    %c0_i32 = arith.constant 0 : i32
    %c0_i32_0 = arith.constant 0 : i32
    %c0_i32_1 = arith.constant 0 : i32
    return %c0_i32, %c0_i32_0 : i32, i32
  }
  func.func @transform_5(%arg0: i32, %arg1: i32) -> (i32, i32, i32, i32, i32) {
    %c0_i32 = arith.constant 0 : i32
    %c0_i32_0 = arith.constant 0 : i32
    %c0_i32_1 = arith.constant 0 : i32
    %c0_i32_2 = arith.constant 0 : i32
    return %arg0, %arg1, %c0_i32, %c0_i32_0, %c0_i32_1 : i32, i32, i32, i32, i32
  }
}

</mosaic_0001>

<llo_original>
// kernel: tile.18
$region0: #{tile.18}
  #allocation0 [shape = 's32[1]{0}', space=sflag, size = 0x4, scoped, tag = 'scoped memory for tile.18']
  %s0 = inlined_call_operand.vmem [shape: f32[8], index: 0, kind: input, shape index: {}]
  %s1 = inlined_call_operand.vmem [shape: f32[2,8], index: 1, kind: output, shape index: {}]
  // Predicated region
  $region2: #{tile.18} parent=0 // pred_check
    _
  $region3: #{tile.18} parent=0 // pred_check_branch
    %3 = sbr.rel (0) target = $region5
  $region4: #{tile.18} parent=0 // pred_region
    _
  $region5: #{tile.18} parent=0 // pred_fallthru
    _
  %v4 = vld [vmem:[%s0] ss:$0 sm:$0xff]
  %5 = vst [vmem:[%s1] sm:$0x3] %v4

// kernel: tile.19
$region0: #{tile.19}
  %s0 = inlined_call_operand.vmem [shape: f32[2,8], index: 0, kind: input, shape index: {}]
  %s1 = inlined_call_operand.vmem [shape: f32[1,16], index: 1, kind: output, shape index: {}]
  $region1: #{tile.19} parent=0
    #allocation0 [shape = 'u8[4096]{0}', space=vmem, size = 0x1000, scoped, tag = 'scoped mem for output reshape']
    #allocation1 [shape = 'u8[4096]{0}', space=vmem, size = 0x1000, scoped, tag = 'scoped mem for input reshape']
    %s3 = sshll.u32 1, 2
    %s4 = ssub.s32 %s3, 1
    %v5 = vld [vmem:[%s0] sm:%s4]
    %6 = vst [vmem:[#allocation1] sm:%s4] %v5
    %v7 = vld [vmem:[#allocation1] sm:$0x1]
    %vm8 = vcmask 64512
    %9 = vst.msk [vmem:[#allocation0] sm:$0x1] %vm8, %v7
    %s10 = scalar_lea.vmem [#allocation1], 1
    %v11 = vld [vmem:[%s10] sm:$0x1]
    %12 = vrot.lane.b32.xlu0 %v11, 8
    %v13 = vpop.permute.xlu0 %12
    %vm14 = vcmask 130112
    %15 = vst.msk [vmem:[#allocation0] sm:$0x1] %vm14, %v13
    %s17 = sshll.u32 1, 1
    %s18 = ssub.s32 %s17, 1
    %v20 = vld [vmem:[#allocation0] sm:%s18]
    %s21 = sshll.u32 1, 1
    %s22 = ssub.s32 %s21, 1
    %23 = vst [vmem:[%s1] sm:%s22] %v20

// kernel: mul.5
$region0: #{mul.5}
  %s0 = inlined_call_operand.vmem [shape: f32[4,8], index: 0, kind: input, shape index: {}]
  %s1 = inlined_call_operand.vmem [shape: f32[32], index: 1, kind: output, shape index: {}]
  $region1: #{mul.5} parent=0
    #allocation0 [shape = 'u8[4096]{0}', space=vmem, size = 0x1000, scoped, tag = 'scoped mem for output reshape']
    #allocation1 [shape = 'u8[4096]{0}', space=vmem, size = 0x1000, scoped, tag = 'scoped mem for input reshape']
    %s3 = sshll.u32 1, 4
    %s4 = ssub.s32 %s3, 1
    %v5 = vld [vmem:[%s0] sm:%s4]
    %6 = vst [vmem:[#allocation1] sm:%s4] %v5
    %v7 = vld [vmem:[#allocation1] sm:$0x1]
    %vm8 = vcmask 64512
    %9 = vst.msk [vmem:[#allocation0] sm:$0x1] %vm8, %v7
    %s10 = scalar_lea.vmem [#allocation1], 3
    %v11 = vld [vmem:[%s10] sm:$0x1]
    %12 = vrot.lane.b32.xlu0 %v11, 24
    %v13 = vpop.permute.xlu0 %12
    %vm14 = vcmask 261312
    %15 = vst.msk [vmem:[#allocation0] sm:$0x1] %vm14, %v13
    %s16 = scalar_lea.vmem [#allocation1], 2
    %v17 = vld [vmem:[%s16] sm:$0x1]
    %18 = vrot.lane.b32.xlu0 %v17, 16
    %v19 = vpop.permute.xlu0 %18
    %vm20 = vcmask 195712
    %21 = vst.msk [vmem:[#allocation0] sm:$0x1] %vm20, %v19
    %s22 = scalar_lea.vmem [#allocation1], 1
    %v23 = vld [vmem:[%s22] sm:$0x1]
    %24 = vrot.lane.b32.xlu0 %v23, 8
    %v25 = vpop.permute.xlu0 %24
    %vm26 = vcmask 130112
    %27 = vst.msk [vmem:[#allocation0] sm:$0x1] %vm26, %v25
    %s29 = sshll.u32 1, 1
    %s30 = ssub.s32 %s29, 1
    %v32 = vld [vmem:[#allocation0] sm:%s30]
    %s33 = sshll.u32 1, 1
    %s34 = ssub.s32 %s33, 1
    %35 = vst [vmem:[%s1] sm:%s34] %v32

// kernel: tile.13
$region0: #{tile.13}
  #allocation0 [shape = 's32[1]{0}', space=sflag, size = 0x4, scoped, tag = 'scoped memory for tile.13']
  %s0 = inlined_call_operand.vmem [shape: f32[8], index: 0, kind: input, shape index: {}]
  %s1 = inlined_call_operand.vmem [shape: f32[4,8], index: 1, kind: output, shape index: {}]
  // Predicated region
  $region2: #{tile.13} parent=0 // pred_check
    _
  $region3: #{tile.13} parent=0 // pred_check_branch
    %3 = sbr.rel (0) target = $region5
  $region4: #{tile.13} parent=0 // pred_region
    _
  $region5: #{tile.13} parent=0 // pred_fallthru
    _
  %v4 = vld [vmem:[%s0] ss:$0 sm:$0xff]
  %5 = vst [vmem:[%s1] sm:$0xf] %v4

// kernel: decode_conv_block.1
$region0: #{decode_conv_block.1}
  #allocation0 [shape = 'u32[]', space=smem, size = 0x4, offset = 0x4, fixed_abs, tag = 'smem constant byte address 0x4 - core index']
  #allocation1 [shape = 'u32[144,128]{1,0:T(1,128)}', space=vmem, size = 0x12000, scoped, tag = 'internal scratch']
  %s0 = inlined_call_operand.vmem [shape: f32[2,16,16,4], index: 0, kind: input, shape index: {}, may-alias: {0,1}]
  %s1 = inlined_call_operand.vmem [shape: f32[2,16,16,4], index: 1, kind: input, shape index: {}, may-alias: {0,1}]
  %s2 = inlined_call_operand.vmem [shape: bf16[8,16], index: 2, kind: input, shape index: {}]
  %s3 = inlined_call_operand.vmem [shape: bf16[16,16], index: 3, kind: input, shape index: {}]
  %s4 = inlined_call_operand.vmem [shape: f32[1,16], index: 4, kind: input, shape index: {}]
  %s5 = inlined_call_operand.vmem [shape: f32[2,16,2,16,16], index: 5, kind: output, shape index: {}]
  %s6 = sld [smem:[#allocation0]]
  $region53: #{decode_conv_block.1} parent=0
    _
  %s8 = ssub.s32 1, %s6
  %s9 = scalar_select 0, %s8, %s6
  loop: start=0, step=1, limit=6
  $region2: #{decode_conv_block.1} parent=0 // loop_pre_header
    _
  $region3: #{decode_conv_block.1} parent=0 // loop_header
    %s11 = sphi 0, %s15
    %p12 = scmp.ge.s32.totalorder %s11, 6
    %s18 = sphi 0, %s30
    %s19 = sphi 0, %s26
    %s20 = sphi 0, %s18
    %s21 = sphi 0, %s19
    %s22 = sphi 0, %s20
    %s23 = sphi 0, %s21
    %s35 = sphi 0, %s37
    %s38 = sphi 0, %s35
    %s39 = sphi 0, %s38
    %s55 = sphi 0, %s39
    %s71 = sphi 0, %s73
    %s74 = sphi 0, %s71
    %s75 = sphi 0, %s74
    %s91 = sphi 0, %s75
    %s95 = sphi 0, %s95
    %s97 = sphi 0, %s95
    %s98 = sphi 0, %s97
    %s112 = sphi 0, %s98
    %s116 = sphi 0, %s116
    %s118 = sphi 0, %s116
    %s119 = sphi 0, %s118
    %s133 = sphi 0, %s119
    %s137 = sphi 0, %s137
    %s139 = sphi 0, %s137
    %s140 = sphi 0, %s139
    %s154 = sphi 0, %s140
    %s162 = sphi 0, %s164
    %s165 = sphi 0, %s162
    %s166 = sphi 0, %s165
    %s182 = sphi 0, %s166
  $region4: #{decode_conv_block.1} parent=0 // loop_header_branch
    %14 = sbr.rel (%p12) target = $region8
  $region5: #{decode_conv_block.1} parent=0 // loop_body
    %s16 = ssub.s32 %s11, 1
    %s17 = ssub.s32 %s11, 2
    %s24 = sadd.s32 1, %s19
    %p25 = scmp.ge.s32.totalorder %s24, 2
    %s26 = scalar_select %p25, 0, %s24
    %s27 = sadd.s32 1, %s18
    %s28 = scalar_select %p25, %s27, %s18
    %p29 = scmp.ge.s32.totalorder %s28, 2
    %s30 = scalar_select %p29, 0, %s28
    %s31 = ssub.s32 %s18, %s30
    %s32 = ssub.s32 %s19, %s26
    %s33 = sor.u32 %s31, %s32
    %p34 = scmp.eq.s32.totalorder %s33, 0
    %s36 = sadd.s32 %s35, 1
    %s37 = scalar_select %p34, %s35, %s36
    %p40 = pneg %p34
    %p41 = scmp.eq.s32.totalorder %s11, 3
    %p42 = por %p40, %p41
    %p43 = scmp.ne.s32.totalorder %s35, %s38
    %p44 = scmp.eq.s32.totalorder %s11, 0
    %p45 = por %p43, %p44
    %p46 = scmp.ne.s32.totalorder %s35, %s38
    %p47 = scmp.eq.s32.totalorder %s16, 3
    %p48 = por %p46, %p47
    %p49 = scmp.ne.s32.totalorder %s38, %s39
    %p50 = scmp.eq.s32.totalorder %s16, 0
    %p51 = por %p49, %p50
    %p52 = scmp.ne.s32.totalorder %s38, %s39
    %p53 = scmp.eq.s32.totalorder %s17, 3
    %p54 = por %p52, %p53
    %p56 = scmp.ne.s32.totalorder %s39, %s55
    %p57 = scmp.eq.s32.totalorder %s17, 0
    %p58 = por %p56, %p57
    %s59 = sadd.s32 %s19, 1
    %s60 = smul.u32 %s59, 8
    %p61 = scmp.lt.s32.totalorder %s60, 15
    %s62 = scalar_select %p61, %s60, 15
    %s63 = sadd.s32 %s26, 1
    %s64 = smul.u32 %s63, 8
    %p65 = scmp.lt.s32.totalorder %s64, 15
    %s66 = scalar_select %p65, %s64, 15
    %s67 = ssub.s32 %s18, %s30
    %s68 = ssub.s32 %s62, %s66
    %s69 = sor.u32 %s67, %s68
    %p70 = scmp.eq.s32.totalorder %s69, 0
    %s72 = sadd.s32 %s71, 1
    %s73 = scalar_select %p70, %s71, %s72
    %p76 = pneg %p70
    %p77 = scmp.eq.s32.totalorder %s11, 3
    %p78 = por %p76, %p77
    %p79 = scmp.ne.s32.totalorder %s71, %s74
    %p80 = scmp.eq.s32.totalorder %s11, 0
    %p81 = por %p79, %p80
    %p82 = scmp.ne.s32.totalorder %s71, %s74
    %p83 = scmp.eq.s32.totalorder %s16, 3
    %p84 = por %p82, %p83
    %p85 = scmp.ne.s32.totalorder %s74, %s75
    %p86 = scmp.eq.s32.totalorder %s16, 0
    %p87 = por %p85, %p86
    %p88 = scmp.ne.s32.totalorder %s74, %s75
    %p89 = scmp.eq.s32.totalorder %s17, 3
    %p90 = por %p88, %p89
    %p92 = scmp.ne.s32.totalorder %s75, %s91
    %p93 = scmp.eq.s32.totalorder %s17, 0
    %p94 = por %p92, %p93
    %s96 = sadd.s32 %s95, 1
    %p99 = scmp.eq.s32.totalorder %s11, 3
    %p100 = scmp.ne.s32.totalorder %s95, %s97
    %p101 = scmp.eq.s32.totalorder %s11, 0
    %p102 = por %p100, %p101
    %p103 = scmp.ne.s32.totalorder %s95, %s97
    %p104 = scmp.eq.s32.totalorder %s16, 3
    %p105 = por %p103, %p104
    %p106 = scmp.ne.s32.totalorder %s97, %s98
    %p107 = scmp.eq.s32.totalorder %s16, 0
    %p108 = por %p106, %p107
    %p109 = scmp.ne.s32.totalorder %s97, %s98
    %p110 = scmp.eq.s32.totalorder %s17, 3
    %p111 = por %p109, %p110
    %p113 = scmp.ne.s32.totalorder %s98, %s112
    %p114 = scmp.eq.s32.totalorder %s17, 0
    %p115 = por %p113, %p114
    %s117 = sadd.s32 %s116, 1
    %p120 = scmp.eq.s32.totalorder %s11, 3
    %p121 = scmp.ne.s32.totalorder %s116, %s118
    %p122 = scmp.eq.s32.totalorder %s11, 0
    %p123 = por %p121, %p122
    %p124 = scmp.ne.s32.totalorder %s116, %s118
    %p125 = scmp.eq.s32.totalorder %s16, 3
    %p126 = por %p124, %p125
    %p127 = scmp.ne.s32.totalorder %s118, %s119
    %p128 = scmp.eq.s32.totalorder %s16, 0
    %p129 = por %p127, %p128
    %p130 = scmp.ne.s32.totalorder %s118, %s119
    %p131 = scmp.eq.s32.totalorder %s17, 3
    %p132 = por %p130, %p131
    %p134 = scmp.ne.s32.totalorder %s119, %s133
    %p135 = scmp.eq.s32.totalorder %s17, 0
    %p136 = por %p134, %p135
    %s138 = sadd.s32 %s137, 1
    %p141 = scmp.eq.s32.totalorder %s11, 3
    %p142 = scmp.ne.s32.totalorder %s137, %s139
    %p143 = scmp.eq.s32.totalorder %s11, 0
    %p144 = por %p142, %p143
    %p145 = scmp.ne.s32.totalorder %s137, %s139
    %p146 = scmp.eq.s32.totalorder %s16, 3
    %p147 = por %p145, %p146
    %p148 = scmp.ne.s32.totalorder %s139, %s140
    %p149 = scmp.eq.s32.totalorder %s16, 0
    %p150 = por %p148, %p149
    %p151 = scmp.ne.s32.totalorder %s139, %s140
    %p152 = scmp.eq.s32.totalorder %s17, 3
    %p153 = por %p151, %p152
    %p155 = scmp.ne.s32.totalorder %s140, %s154
    %p156 = scmp.eq.s32.totalorder %s17, 0
    %p157 = por %p155, %p156
    %s158 = ssub.s32 %s18, %s30
    %s159 = ssub.s32 %s19, %s26
    %s160 = sor.u32 %s158, %s159
    %p161 = scmp.eq.s32.totalorder %s160, 0
    %s163 = sadd.s32 %s162, 1
    %s164 = scalar_select %p161, %s162, %s163
    %p167 = pneg %p161
    %p168 = scmp.eq.s32.totalorder %s11, 3
    %p169 = por %p167, %p168
    %p170 = scmp.ne.s32.totalorder %s162, %s165
    %p171 = scmp.eq.s32.totalorder %s11, 0
    %p172 = por %p170, %p171
    %p173 = scmp.ne.s32.totalorder %s162, %s165
    %p174 = scmp.eq.s32.totalorder %s16, 3
    %p175 = por %p173, %p174
    %p176 = scmp.ne.s32.totalorder %s165, %s166
    %p177 = scmp.eq.s32.totalorder %s16, 0
    %p178 = por %p176, %p177
    %p179 = scmp.ne.s32.totalorder %s165, %s166
    %p180 = scmp.eq.s32.totalorder %s17, 3
    %p181 = por %p179, %p180
    %p183 = scmp.ne.s32.totalorder %s166, %s182
    %p184 = scmp.eq.s32.totalorder %s17, 0
    %p185 = por %p183, %p184
    %p186 = scmp.le.s32.totalorder 1, %s11
    %p187 = scmp.lt.s32.totalorder %s11, 5
    %p188 = pnand %p186, %p187
    %p189 = pneg %p188
    // Predicated region
    $region9: #{decode_conv_block.1} parent=5 // pred_check
      _
    $region10: #{decode_conv_block.1} parent=5 // pred_check_branch
      %191 = sbr.rel (%p188) target = $region12
    $region11: #{decode_conv_block.1} parent=5 // pred_region
      %s192 = ssub.s32 %s11, 1
      // Predicated region
      $region13: #{decode_conv_block.1} parent=11 // pred_check
        %p193 = pneg %p108
      $region14: #{decode_conv_block.1} parent=11 // pred_check_branch
        %195 = sbr.rel (%p193) target = $region16
      $region15: #{decode_conv_block.1} parent=11 // pred_region
        _
      $region16: #{decode_conv_block.1} parent=11 // pred_fallthru
        _
      // Predicated region
      $region17: #{decode_conv_block.1} parent=11 // pred_check
        %p196 = pneg %p129
      $region18: #{decode_conv_block.1} parent=11 // pred_check_branch
        %198 = sbr.rel (%p196) target = $region20
      $region19: #{decode_conv_block.1} parent=11 // pred_region
        _
      $region20: #{decode_conv_block.1} parent=11 // pred_fallthru
        _
      // Predicated region
      $region21: #{decode_conv_block.1} parent=11 // pred_check
        %p199 = pneg %p150
      $region22: #{decode_conv_block.1} parent=11 // pred_check_branch
        %201 = sbr.rel (%p199) target = $region24
      $region23: #{decode_conv_block.1} parent=11 // pred_region
        _
      $region24: #{decode_conv_block.1} parent=11 // pred_fallthru
        _
    $region12: #{decode_conv_block.1} parent=5 // pred_fallthru
      _
    %p202 = scmp.lt.s32.totalorder %s11, 4
    // Predicated region
    $region25: #{decode_conv_block.1} parent=5 // pred_check
      %p203 = pneg %p202
    $region26: #{decode_conv_block.1} parent=5 // pred_check_branch
      %205 = sbr.rel (%p203) target = $region28
    $region27: #{decode_conv_block.1} parent=5 // pred_region
      // Predicated region
      $region29: #{decode_conv_block.1} parent=27 // pred_check
        %p206 = pneg %p45
      $region30: #{decode_conv_block.1} parent=27 // pred_check_branch
        %208 = sbr.rel (%p206) target = $region32
      $region31: #{decode_conv_block.1} parent=27 // pred_region
        %s209 = smul.u32 8, %s19
        %p210 = scmp.lt.s32.totalorder %s18, 1
        %s211 = scalar_select %p210, %s18, 1
        %p212 = scmp.lt.s32.totalorder %s209, 15
        %s213 = scalar_select %p212, %s209, 15
        %s214 = smul.addr %s213, 2
        %s215 = smul.addr %s211, 32
        %s216 = sadd.s32 %s214, %s215
        %s217 = smul.addr %s216, 8
        %s218 = scalar_lea.vmem %s0, %s217
        %s219 = smul.u32 8, %s19
      $region32: #{decode_conv_block.1} parent=27 // pred_fallthru
        _
      // Predicated region
      $region33: #{decode_conv_block.1} parent=27 // pred_check
        %p220 = pneg %p81
      $region34: #{decode_conv_block.1} parent=27 // pred_check_branch
        %222 = sbr.rel (%p220) target = $region36
      $region35: #{decode_conv_block.1} parent=27 // pred_region
        %s223 = sadd.s32 %s19, 1
        %s224 = smul.u32 %s223, 8
        %p225 = scmp.lt.s32.totalorder %s224, 15
        %s226 = scalar_select %p225, %s224, 15
        %p227 = scmp.lt.s32.totalorder %s18, 1
        %s228 = scalar_select %p227, %s18, 1
        %p229 = scmp.lt.s32.totalorder %s226, 15
        %s230 = scalar_select %p229, %s226, 15
        %s231 = smul.addr %s230, 2
        %s232 = smul.addr %s228, 32
        %s233 = sadd.s32 %s231, %s232
        %s234 = smul.addr %s233, 8
        %s235 = scalar_lea.vmem %s1, %s234
        %s236 = sadd.s32 %s19, 1
        %s237 = smul.u32 %s236, 8
        %p238 = scmp.lt.s32.totalorder %s237, 15
        %s239 = scalar_select %p238, %s237, 15
      $region36: #{decode_conv_block.1} parent=27 // pred_fallthru
        _
    $region28: #{decode_conv_block.1} parent=5 // pred_fallthru
      _
    %p240 = scmp.le.s32.totalorder 1, %s11
    %p241 = scmp.lt.s32.totalorder %s11, 5
    %p242 = pnand %p240, %p241
    %p243 = pneg %p242
    // Predicated region
    $region37: #{decode_conv_block.1} parent=5 // pred_check
      _
    $region38: #{decode_conv_block.1} parent=5 // pred_check_branch
      %245 = sbr.rel (%p242) target = $region40
    $region39: #{decode_conv_block.1} parent=5 // pred_region
      %s246 = ssub.s32 %s11, 1
      %s247 = smul.u32 8, %s21
      %p248 = scmp.lt.s32.totalorder %s20, 1
      %s249 = scalar_select %p248, %s20, 1
      %p250 = scmp.lt.s32.totalorder %s247, 15
      %s251 = scalar_select %p250, %s247, 15
      %s252 = smul.addr %s251, 2
      %s253 = smul.addr %s249, 32
      %s254 = sadd.s32 %s252, %s253
      %s255 = smul.addr %s254, 8
      %s256 = scalar_lea.vmem %s0, %s255
      %p257 = pneg %p51
      %p258 = pneg %p48
      %s259 = sadd.s32 %s21, 1
      %s260 = smul.u32 %s259, 8
      %p261 = scmp.lt.s32.totalorder %s260, 15
      %s262 = scalar_select %p261, %s260, 15
      %p263 = scmp.lt.s32.totalorder %s20, 1
      %s264 = scalar_select %p263, %s20, 1
      %p265 = scmp.lt.s32.totalorder %s262, 15
      %s266 = scalar_select %p265, %s262, 15
      %s267 = smul.addr %s266, 2
      %s268 = smul.addr %s264, 32
      %s269 = sadd.s32 %s267, %s268
      %s270 = smul.addr %s269, 8
      %s271 = scalar_lea.vmem %s1, %s270
      %p272 = pneg %p87
      %p273 = pneg %p84
      %p274 = pneg %p108
      %p275 = pneg %p105
      %p276 = pneg %p129
      %p277 = pneg %p126
      %p278 = pneg %p150
      %p279 = pneg %p147
      %p280 = pneg %p178
      %p281 = pneg %p175
      %s282 = smul.u32 8, %s21
      %p283 = scmp.lt.s32.totalorder %s20, 1
      %s284 = scalar_select %p283, %s20, 1
      %p285 = scmp.lt.s32.totalorder %s282, 15
      %s286 = scalar_select %p285, %s282, 15
      %s287 = smul.addr %s286, 4
      %s288 = smul.addr %s284, 64
      %s289 = sadd.s32 %s287, %s288
      %s290 = smul.addr %s289, 8
      %s291 = scalar_lea.vmem %s5, %s290
      %s292 = smul.u32 8, %s21
      %p293 = scmp.lt.s32.totalorder %s20, 1
      %s294 = scalar_select %p293, %s20, 1
      %p295 = scmp.lt.s32.totalorder %s292, 15
      %s296 = scalar_select %p295, %s292, 15
      %s297 = smul.addr %s296, 2
      %s298 = smul.addr %s294, 32
      %s299 = sadd.s32 %s297, %s298
      %s300 = smul.addr %s299, 8
      %s301 = scalar_lea.vmem %s0, %s300
      %s302 = smul.u32 8, %s21
      %s303 = sadd.s32 %s21, 1
      %s304 = smul.u32 %s303, 8
      %p305 = scmp.lt.s32.totalorder %s304, 15
      %s306 = scalar_select %p305, %s304, 15
      %p307 = scmp.lt.s32.totalorder %s20, 1
      %s308 = scalar_select %p307, %s20, 1
      %p309 = scmp.lt.s32.totalorder %s306, 15
      %s310 = scalar_select %p309, %s306, 15
      %s311 = smul.addr %s310, 2
      %s312 = smul.addr %s308, 32
      %s313 = sadd.s32 %s311, %s312
      %s314 = smul.addr %s313, 8
      %s315 = scalar_lea.vmem %s1, %s314
      %s316 = sadd.s32 %s21, 1
      %s317 = smul.u32 %s316, 8
      %p318 = scmp.lt.s32.totalorder %s317, 15
      %s319 = scalar_select %p318, %s317, 15
      %s320 = smul.u32 8, %s21
      %p321 = scmp.lt.s32.totalorder %s20, 1
      %s322 = scalar_select %p321, %s20, 1
      %p323 = scmp.lt.s32.totalorder %s320, 15
      %s324 = scalar_select %p323, %s320, 15
      %s325 = smul.addr %s324, 4
      %s326 = smul.addr %s322, 64
      %s327 = sadd.s32 %s325, %s326
      %s328 = smul.addr %s327, 8
      %s329 = scalar_lea.vmem %s5, %s328
      %s330 = smul.u32 8, %s21
      %v332 = vld [vmem:[%s301] sm:$0xff]
      %v333 = vld [vmem:[%s301 + $0x8] sm:$0xff]
      %v334 = vld [vmem:[%s301 + $0x10] sm:$0xff]
      %v335 = vld [vmem:[%s301 + $0x18] sm:$0xff]
      %v336 = vld [vmem:[%s301 + $0x20] sm:$0xff]
      %v337 = vld [vmem:[%s301 + $0x28] sm:$0xff]
      %v338 = vld [vmem:[%s301 + $0x30] sm:$0xff]
      %v339 = vld [vmem:[%s301 + $0x38] sm:$0xff]
      %v340 = vld [vmem:[%s301 + $0x40] sm:$0xff]
      %v341 = vld [vmem:[%s301 + $0x48] sm:$0xff]
      %v342 = vld [vmem:[%s301 + $0x50] sm:$0xff]
      %v343 = vld [vmem:[%s301 + $0x58] sm:$0xff]
      %v344 = vld [vmem:[%s301 + $0x60] sm:$0xff]
      %v345 = vld [vmem:[%s301 + $0x68] sm:$0xff]
      %v346 = vld [vmem:[%s301 + $0x70] sm:$0xff]
      %v347 = vld [vmem:[%s301 + $0x78] sm:$0xff]
      %v348 = vpack.c.bf16 %v333, %v332
      %v349 = vpack.c.bf16 %v335, %v334
      %v350 = vpack.c.bf16 %v337, %v336
      %v351 = vpack.c.bf16 %v339, %v338
      %v352 = vpack.c.bf16 %v341, %v340
      %v353 = vpack.c.bf16 %v343, %v342
      %v354 = vpack.c.bf16 %v345, %v344
      %v355 = vpack.c.bf16 %v347, %v346
      %v356 = vld [vmem:[%s315] sm:$0xff]
      %v357 = vld [vmem:[%s315 + $0x8] sm:$0xff]
      %v358 = vpack.c.bf16 %v357, %v356
      %p359 = scmp.lt.s32.totalorder %s21, 1
      %s360 = scalar_select %p359, 1, 0
      %s361 = scvt.s32.f32 %s360
      %p363 = scmp.ne.f32.partialorder %s361, %s361
      %s364 = sshrl.u32 %s361, 16
      %s365 = sand.u32 %s364, 1
      %s366 = sadd.s32 32767, %s365
      %s367 = sadd.s32 %s361, %s366
      %s368 = sand.u32 %s367, 4294901760
      %s369 = scalar_select %p363, 2143289344, %s368
      %s371 = sshrl.u32 %s369, 16
      %s372 = sshll.u32 %s371, 16
      %s373 = sor.u32 %s371, %s372
      %v374 = vstv %s373
      %v376 = vmul.bf16 %v358, %v374
      %v378 = vshrl.u32 %v348, 16
      %v380 = vshll.u32 %v348, 16
      %v382 = vrot.slane %v380, 1
      %v383 = vor.u32 %v378, %v382
      %v385 = vshrl.u32 %v349, 16
      %v387 = vshll.u32 %v349, 16
      %v389 = vrot.slane %v387, 1
      %v390 = vor.u32 %v385, %v389
      %v392 = vshrl.u32 %v350, 16
      %v394 = vshll.u32 %v350, 16
      %v396 = vrot.slane %v394, 1
      %v397 = vor.u32 %v392, %v396
      %v399 = vshrl.u32 %v351, 16
      %v401 = vshll.u32 %v351, 16
      %v403 = vrot.slane %v401, 1
      %v404 = vor.u32 %v399, %v403
      %v406 = vshrl.u32 %v352, 16
      %v408 = vshll.u32 %v352, 16
      %v410 = vrot.slane %v408, 1
      %v411 = vor.u32 %v406, %v410
      %v413 = vshrl.u32 %v353, 16
      %v415 = vshll.u32 %v353, 16
      %v417 = vrot.slane %v415, 1
      %v418 = vor.u32 %v413, %v417
      %v420 = vshrl.u32 %v354, 16
      %v422 = vshll.u32 %v354, 16
      %v424 = vrot.slane %v422, 1
      %v425 = vor.u32 %v420, %v424
      %v427 = vshrl.u32 %v355, 16
      %v429 = vshll.u32 %v355, 16
      %v431 = vrot.slane %v429, 1
      %v432 = vor.u32 %v427, %v431
      %vm441 = vcmask 1047552
      %vm442 = vsmask.f32 7424
      %vm443 = vmand %vm441, %vm442
      %v444 = vsel %vm443, %v383, 0
      %v445 = vsel %vm443, %v390, 0
      %v446 = vsel %vm443, %v397, 0
      %v447 = vsel %vm443, %v404, 0
      %v448 = vsel %vm443, %v411, 0
      %v449 = vsel %vm443, %v418, 0
      %v450 = vsel %vm443, %v425, 0
      %v451 = vsel %vm443, %v432, 0
      %v453 = vshrl.u32 %v376, 16
      %v455 = vshll.u32 %v376, 16
      %v457 = vrot.slane %v455, 1
      %v458 = vor.u32 %v453, %v457
      %v460 = vsel %vm443, %v458, 0
      %469 = vrot.lane.b32.xlu0 %v444, 4
      %v470 = vpop.permute.xlu0 %469
      %471 = vrot.lane.b32.xlu0 %v445, 4
      %v472 = vpop.permute.xlu0 %471
      %473 = vrot.lane.b32.xlu0 %v446, 4
      %v474 = vpop.permute.xlu0 %473
      %475 = vrot.lane.b32.xlu0 %v447, 4
      %v476 = vpop.permute.xlu0 %475
      %477 = vrot.lane.b32.xlu0 %v448, 4
      %v478 = vpop.permute.xlu0 %477
      %479 = vrot.lane.b32.xlu0 %v449, 4
      %v480 = vpop.permute.xlu0 %479
      %481 = vrot.lane.b32.xlu0 %v450, 4
      %v482 = vpop.permute.xlu0 %481
      %483 = vrot.lane.b32.xlu0 %v451, 4
      %v484 = vpop.permute.xlu0 %483
      %vm485 = vcmask 31744
      %v487 = vsel %vm485, %v348, %v470
      %v489 = vsel %vm485, %v349, %v472
      %v491 = vsel %vm485, %v350, %v474
      %v493 = vsel %vm485, %v351, %v476
      %v495 = vsel %vm485, %v352, %v478
      %v497 = vsel %vm485, %v353, %v480
      %v499 = vsel %vm485, %v354, %v482
      %v501 = vsel %vm485, %v355, %v484
      %510 = vrot.lane.b32.xlu0 %v349, 8
      %v511 = vpop.permute.xlu0 %510
      %512 = vrot.lane.b32.xlu0 %v350, 8
      %v513 = vpop.permute.xlu0 %512
      %514 = vrot.lane.b32.xlu0 %v351, 8
      %v515 = vpop.permute.xlu0 %514
      %516 = vrot.lane.b32.xlu0 %v352, 8
      %v517 = vpop.permute.xlu0 %516
      %518 = vrot.lane.b32.xlu0 %v353, 8
      %v519 = vpop.permute.xlu0 %518
      %520 = vrot.lane.b32.xlu0 %v354, 8
      %v521 = vpop.permute.xlu0 %520
      %522 = vrot.lane.b32.xlu0 %v355, 8
      %v523 = vpop.permute.xlu0 %522
      %524 = vrot.lane.b32.xlu0 %v376, 8
      %v525 = vpop.permute.xlu0 %524
      %527 = vrot.lane.b32.xlu0 %v445, 12
      %v528 = vpop.permute.xlu0 %527
      %529 = vrot.lane.b32.xlu0 %v446, 12
      %v530 = vpop.permute.xlu0 %529
      %531 = vrot.lane.b32.xlu0 %v447, 12
      %v532 = vpop.permute.xlu0 %531
      %533 = vrot.lane.b32.xlu0 %v448, 12
      %v534 = vpop.permute.xlu0 %533
      %535 = vrot.lane.b32.xlu0 %v449, 12
      %v536 = vpop.permute.xlu0 %535
      %537 = vrot.lane.b32.xlu0 %v450, 12
      %v538 = vpop.permute.xlu0 %537
      %539 = vrot.lane.b32.xlu0 %v451, 12
      %v540 = vpop.permute.xlu0 %539
      %541 = vrot.lane.b32.xlu0 %v460, 12
      %v542 = vpop.permute.xlu0 %541
      %vm543 = vcmask 64512
      %v545 = vsel %vm543, %v487, %v511
      %v547 = vsel %vm543, %v489, %v513
      %v549 = vsel %vm543, %v491, %v515
      %v551 = vsel %vm543, %v493, %v517
      %v553 = vsel %vm543, %v495, %v519
      %v555 = vsel %vm543, %v497, %v521
      %v557 = vsel %vm543, %v499, %v523
      %v559 = vsel %vm543, %v501, %v525
      %vm560 = vcmask 97280
      %v562 = vsel %vm560, %v545, %v528
      %v564 = vsel %vm560, %v547, %v530
      %v566 = vsel %vm560, %v549, %v532
      %v568 = vsel %vm560, %v551, %v534
      %v570 = vsel %vm560, %v553, %v536
      %v572 = vsel %vm560, %v555, %v538
      %v574 = vsel %vm560, %v557, %v540
      %v576 = vsel %vm560, %v559, %v542
      %v577 = vld [vmem:[%s4] sm:$0x1]
      %v578 = vld [vmem:[%s2] sm:$0xf]
      %v579 = vld [vmem:[%s3] sm:$0xf]
      %v580 = vld [vmem:[%s3 + $0x4] sm:$0xf]
      %v582 = vlaneseq
      %v583 = vshrl.u32 %v582, 7
      %v584 = vsub.s32 0, %v583
      %v585 = vrot.slane %v577, %v584
      %v587 = vsel %vm543, %v487, 0
      %v589 = vsel %vm543, %v489, 0
      %v591 = vsel %vm543, %v491, 0
      %v593 = vsel %vm543, %v493, 0
      %v595 = vsel %vm543, %v495, 0
      %v597 = vsel %vm543, %v497, 0
      %v599 = vsel %vm543, %v499, 0
      %v601 = vsel %vm543, %v501, 0
      %vm603 = vcmask 1043456
      %v605 = vsel %vm603, %v578, 0
      %607 = vmatprep.subr.bf16.mxu0 0
      %608 = vmatpush1.bf16.msra.mxu0 0
      %609 = vmatprep.subr.bf16.mxu0 0
      %610 = vmatpush1.bf16.msra.mxu0 0
      %611 = vmatprep.subr.bf16.mxu0 0
      %612 = vmatpush1.bf16.msra.mxu0 0
      %613 = vmatprep.subr.bf16.mxu0 0
      %614 = vmatpush1.bf16.msra.mxu0 0
      %615 = vmatprep.subr.bf16.mxu0 0
      %616 = vmatpush1.bf16.msra.mxu0 0
      %617 = vmatprep.subr.bf16.mxu0 0
      %618 = vmatpush1.bf16.msra.mxu0 0
      %619 = vmatprep.subr.bf16.mxu0 0
      %620 = vmatpush1.bf16.msra.mxu0 0
      %621 = vmatprep.subr.bf16.mxu0 0
      %622 = vmatpush1.bf16.msra.mxu0 %v605
      %623 = vmatprep.subr.bf16.mxu0 0
      %624 = vmatpush2.bf16.msra.mxu0 0
      %625 = vmatprep.subr.bf16.mxu0 0
      %626 = vmatpush2.bf16.msra.mxu0 0
      %627 = vmatprep.subr.bf16.mxu0 0
      %628 = vmatpush2.bf16.msra.mxu0 0
      %629 = vmatprep.subr.bf16.mxu0 0
      %630 = vmatpush2.bf16.msra.mxu0 0
      %631 = vmatprep.subr.bf16.mxu0 0
      %632 = vmatpush2.bf16.msra.mxu0 0
      %633 = vmatprep.subr.bf16.mxu0 0
      %634 = vmatpush2.bf16.msra.mxu0 0
      %635 = vmatprep.subr.bf16.mxu0 0
      %636 = vmatpush2.bf16.msra.mxu0 0
      %637 = vmatprep.subr.bf16.mxu0 0
      %638 = vmatpush2.bf16.msra.mxu0 0
      %639 = vmatprep.mubr.bf16.mxu0 0
      %640 = vmatmul.mubr.bf16.gmra.mxu0 %v587
      %v641 = vpop.f32.mrf.mxu0
      %v642 = vadd.f32 %v585, %v641
      %v643 = vpop.f32.mrf.mxu0
      %v644 = vpop.f32.mrf.mxu0
      %v645 = vadd.f32 %v585, %v644
      %v646 = vpop.f32.mrf.mxu0
      %647 = vmatprep.mubr.bf16.mxu0 0
      %648 = vmatmul.mubr.bf16.gmra.mxu0 %v589
      %v649 = vpop.f32.mrf.mxu0
      %v650 = vadd.f32 %v585, %v649
      %v651 = vpop.f32.mrf.mxu0
      %v652 = vpop.f32.mrf.mxu0
      %v653 = vadd.f32 %v585, %v652
      %v654 = vpop.f32.mrf.mxu0
      %655 = vmatprep.mubr.bf16.mxu0 0
      %656 = vmatmul.mubr.bf16.gmra.mxu0 %v591
      %v657 = vpop.f32.mrf.mxu0
      %v658 = vadd.f32 %v585, %v657
      %v659 = vpop.f32.mrf.mxu0
      %v660 = vpop.f32.mrf.mxu0
      %v661 = vadd.f32 %v585, %v660
      %v662 = vpop.f32.mrf.mxu0
      %663 = vmatprep.mubr.bf16.mxu0 0
      %664 = vmatmul.mubr.bf16.gmra.mxu0 %v593
      %v665 = vpop.f32.mrf.mxu0
      %v666 = vadd.f32 %v585, %v665
      %v667 = vpop.f32.mrf.mxu0
      %v668 = vpop.f32.mrf.mxu0
      %v669 = vadd.f32 %v585, %v668
      %v670 = vpop.f32.mrf.mxu0
      %671 = vmatprep.mubr.bf16.mxu0 0
      %672 = vmatmul.mubr.bf16.gmra.mxu0 %v595
      %v673 = vpop.f32.mrf.mxu0
      %v674 = vadd.f32 %v585, %v673
      %v675 = vpop.f32.mrf.mxu0
      %v676 = vpop.f32.mrf.mxu0
      %v677 = vadd.f32 %v585, %v676
      %v678 = vpop.f32.mrf.mxu0
      %679 = vmatprep.mubr.bf16.mxu0 0
      %680 = vmatmul.mubr.bf16.gmra.mxu0 %v597
      %v681 = vpop.f32.mrf.mxu0
      %v682 = vadd.f32 %v585, %v681
      %v683 = vpop.f32.mrf.mxu0
      %v684 = vpop.f32.mrf.mxu0
      %v685 = vadd.f32 %v585, %v684
      %v686 = vpop.f32.mrf.mxu0
      %687 = vmatprep.mubr.bf16.mxu0 0
      %688 = vmatmul.mubr.bf16.gmra.mxu0 %v599
      %v689 = vpop.f32.mrf.mxu0
      %v690 = vadd.f32 %v585, %v689
      %v691 = vpop.f32.mrf.mxu0
      %v692 = vpop.f32.mrf.mxu0
      %v693 = vadd.f32 %v585, %v692
      %v694 = vpop.f32.mrf.mxu0
      %695 = vmatprep.mubr.bf16.mxu0 0
      %696 = vmatmul.mubr.bf16.gmra.mxu0 %v601
      %v697 = vpop.f32.mrf.mxu0
      %v698 = vadd.f32 %v585, %v697
      %v699 = vpop.f32.mrf.mxu0
      %v700 = vpop.f32.mrf.mxu0
      %v701 = vadd.f32 %v585, %v700
      %v702 = vpop.f32.mrf.mxu0
      %703 = vdwg.mxu0
      %v704 = vmax.f32 %v642, 0.0
      %v705 = vmax.f32 %v645, 0.0
      %v706 = vmax.f32 %v650, 0.0
      %v707 = vmax.f32 %v653, 0.0
      %v708 = vmax.f32 %v658, 0.0
      %v709 = vmax.f32 %v661, 0.0
      %v710 = vmax.f32 %v666, 0.0
      %v711 = vmax.f32 %v669, 0.0
      %v712 = vmax.f32 %v674, 0.0
      %v713 = vmax.f32 %v677, 0.0
      %v714 = vmax.f32 %v682, 0.0
      %v715 = vmax.f32 %v685, 0.0
      %v716 = vmax.f32 %v690, 0.0
      %v717 = vmax.f32 %v693, 0.0
      %v718 = vmax.f32 %v698, 0.0
      %v719 = vmax.f32 %v701, 0.0
      %v722 = vunpack.c.l.b16 %v579
      %v723 = vunpack.c.l.b16 %v580
      %v724 = vpack.c.b16 %v723, %v722
      %vm726 = vcmask 130048
      %v727 = vsel %vm726, %v562, 0
      %v729 = vsel %vm726, %v564, 0
      %v731 = vsel %vm726, %v566, 0
      %v733 = vsel %vm726, %v568, 0
      %v735 = vsel %vm726, %v570, 0
      %v737 = vsel %vm726, %v572, 0
      %v739 = vsel %vm726, %v574, 0
      %v741 = vsel %vm726, %v576, 0
      %743 = vmatprep.subr.bf16.mxu0 0
      %744 = vmatpush1.bf16.msra.mxu0 0
      %745 = vmatprep.subr.bf16.mxu0 0
      %746 = vmatpush1.bf16.msra.mxu0 0
      %747 = vmatprep.subr.bf16.mxu0 0
      %748 = vmatpush1.bf16.msra.mxu0 0
      %749 = vmatprep.subr.bf16.mxu0 0
      %750 = vmatpush1.bf16.msra.mxu0 0
      %751 = vmatprep.subr.bf16.mxu0 0
      %752 = vmatpush1.bf16.msra.mxu0 0
      %753 = vmatprep.subr.bf16.mxu0 0
      %754 = vmatpush1.bf16.msra.mxu0 0
      %755 = vmatprep.subr.bf16.mxu0 0
      %756 = vmatpush1.bf16.msra.mxu0 0
      %757 = vmatprep.subr.bf16.mxu0 0
      %758 = vmatpush1.bf16.msra.mxu0 %v724
      %759 = vmatprep.subr.bf16.mxu0 0
      %760 = vmatpush2.bf16.msra.mxu0 0
      %761 = vmatprep.subr.bf16.mxu0 0
      %762 = vmatpush2.bf16.msra.mxu0 0
      %763 = vmatprep.subr.bf16.mxu0 0
      %764 = vmatpush2.bf16.msra.mxu0 0
      %765 = vmatprep.subr.bf16.mxu0 0
      %766 = vmatpush2.bf16.msra.mxu0 0
      %767 = vmatprep.subr.bf16.mxu0 0
      %768 = vmatpush2.bf16.msra.mxu0 0
      %769 = vmatprep.subr.bf16.mxu0 0
      %770 = vmatpush2.bf16.msra.mxu0 0
      %771 = vmatprep.subr.bf16.mxu0 0
      %772 = vmatpush2.bf16.msra.mxu0 0
      %773 = vmatprep.subr.bf16.mxu0 0
      %774 = vmatpush2.bf16.msra.mxu0 0
      %775 = vmatprep.mubr.bf16.mxu0 0
      %776 = vmatmul.mubr.bf16.gmra.mxu0 %v727
      %v777 = vpop.f32.mrf.mxu0
      %v778 = vadd.f32 %v585, %v777
      %v779 = vpop.f32.mrf.mxu0
      %v780 = vpop.f32.mrf.mxu0
      %v781 = vadd.f32 %v585, %v780
      %v782 = vpop.f32.mrf.mxu0
      %783 = vmatprep.mubr.bf16.mxu0 0
      %784 = vmatmul.mubr.bf16.gmra.mxu0 %v729
      %v785 = vpop.f32.mrf.mxu0
      %v786 = vadd.f32 %v585, %v785
      %v787 = vpop.f32.mrf.mxu0
      %v788 = vpop.f32.mrf.mxu0
      %v789 = vadd.f32 %v585, %v788
      %v790 = vpop.f32.mrf.mxu0
      %791 = vmatprep.mubr.bf16.mxu0 0
      %792 = vmatmul.mubr.bf16.gmra.mxu0 %v731
      %v793 = vpop.f32.mrf.mxu0
      %v794 = vadd.f32 %v585, %v793
      %v795 = vpop.f32.mrf.mxu0
      %v796 = vpop.f32.mrf.mxu0
      %v797 = vadd.f32 %v585, %v796
      %v798 = vpop.f32.mrf.mxu0
      %799 = vmatprep.mubr.bf16.mxu0 0
      %800 = vmatmul.mubr.bf16.gmra.mxu0 %v733
      %v801 = vpop.f32.mrf.mxu0
      %v802 = vadd.f32 %v585, %v801
      %v803 = vpop.f32.mrf.mxu0
      %v804 = vpop.f32.mrf.mxu0
      %v805 = vadd.f32 %v585, %v804
      %v806 = vpop.f32.mrf.mxu0
      %807 = vmatprep.mubr.bf16.mxu0 0
      %808 = vmatmul.mubr.bf16.gmra.mxu0 %v735
      %v809 = vpop.f32.mrf.mxu0
      %v810 = vadd.f32 %v585, %v809
      %v811 = vpop.f32.mrf.mxu0
      %v812 = vpop.f32.mrf.mxu0
      %v813 = vadd.f32 %v585, %v812
      %v814 = vpop.f32.mrf.mxu0
      %815 = vmatprep.mubr.bf16.mxu0 0
      %816 = vmatmul.mubr.bf16.gmra.mxu0 %v737
      %v817 = vpop.f32.mrf.mxu0
      %v818 = vadd.f32 %v585, %v817
      %v819 = vpop.f32.mrf.mxu0
      %v820 = vpop.f32.mrf.mxu0
      %v821 = vadd.f32 %v585, %v820
      %v822 = vpop.f32.mrf.mxu0
      %823 = vmatprep.mubr.bf16.mxu0 0
      %824 = vmatmul.mubr.bf16.gmra.mxu0 %v739
      %v825 = vpop.f32.mrf.mxu0
      %v826 = vadd.f32 %v585, %v825
      %v827 = vpop.f32.mrf.mxu0
      %v828 = vpop.f32.mrf.mxu0
      %v829 = vadd.f32 %v585, %v828
      %v830 = vpop.f32.mrf.mxu0
      %831 = vmatprep.mubr.bf16.mxu0 0
      %832 = vmatmul.mubr.bf16.gmra.mxu0 %v741
      %v833 = vpop.f32.mrf.mxu0
      %v834 = vadd.f32 %v585, %v833
      %v835 = vpop.f32.mrf.mxu0
      %v836 = vpop.f32.mrf.mxu0
      %v837 = vadd.f32 %v585, %v836
      %v838 = vpop.f32.mrf.mxu0
      %839 = vdwg.mxu0
      %v840 = vmax.f32 %v778, 0.0
      %v841 = vmax.f32 %v781, 0.0
      %v842 = vmax.f32 %v786, 0.0
      %v843 = vmax.f32 %v789, 0.0
      %v844 = vmax.f32 %v794, 0.0
      %v845 = vmax.f32 %v797, 0.0
      %v846 = vmax.f32 %v802, 0.0
      %v847 = vmax.f32 %v805, 0.0
      %v848 = vmax.f32 %v810, 0.0
      %v849 = vmax.f32 %v813, 0.0
      %v850 = vmax.f32 %v818, 0.0
      %v851 = vmax.f32 %v821, 0.0
      %v852 = vmax.f32 %v826, 0.0
      %v853 = vmax.f32 %v829, 0.0
      %v854 = vmax.f32 %v834, 0.0
      %v855 = vmax.f32 %v837, 0.0
      %856 = vst.msk [vmem:[%s329] sm:$0xff] %vm726, %v704
      %857 = vst.msk [vmem:[%s329 + $0x8] sm:$0xff] %vm726, %v705
      %858 = vst.msk [vmem:[%s329 + $0x20] sm:$0xff] %vm726, %v706
      %859 = vst.msk [vmem:[%s329 + $0x28] sm:$0xff] %vm726, %v707
      %860 = vst.msk [vmem:[%s329 + $0x40] sm:$0xff] %vm726, %v708
      %861 = vst.msk [vmem:[%s329 + $0x48] sm:$0xff] %vm726, %v709
      %862 = vst.msk [vmem:[%s329 + $0x60] sm:$0xff] %vm726, %v710
      %863 = vst.msk [vmem:[%s329 + $0x68] sm:$0xff] %vm726, %v711
      %864 = vst.msk [vmem:[%s329 + $0x80] sm:$0xff] %vm726, %v712
      %865 = vst.msk [vmem:[%s329 + $0x88] sm:$0xff] %vm726, %v713
      %866 = vst.msk [vmem:[%s329 + $0xa0] sm:$0xff] %vm726, %v714
      %867 = vst.msk [vmem:[%s329 + $0xa8] sm:$0xff] %vm726, %v715
      %868 = vst.msk [vmem:[%s329 + $0xc0] sm:$0xff] %vm726, %v716
      %869 = vst.msk [vmem:[%s329 + $0xc8] sm:$0xff] %vm726, %v717
      %870 = vst.msk [vmem:[%s329 + $0xe0] sm:$0xff] %vm726, %v718
      %871 = vst.msk [vmem:[%s329 + $0xe8] sm:$0xff] %vm726, %v719
      %s872 = scalar_lea.vmem %s329, 16
      %873 = vst.msk [vmem:[%s872] sm:$0xff] %vm726, %v840
      %874 = vst.msk [vmem:[%s872 + $0x8] sm:$0xff] %vm726, %v841
      %875 = vst.msk [vmem:[%s872 + $0x20] sm:$0xff] %vm726, %v842
      %876 = vst.msk [vmem:[%s872 + $0x28] sm:$0xff] %vm726, %v843
      %877 = vst.msk [vmem:[%s872 + $0x40] sm:$0xff] %vm726, %v844
      %878 = vst.msk [vmem:[%s872 + $0x48] sm:$0xff] %vm726, %v845
      %879 = vst.msk [vmem:[%s872 + $0x60] sm:$0xff] %vm726, %v846
      %880 = vst.msk [vmem:[%s872 + $0x68] sm:$0xff] %vm726, %v847
      %881 = vst.msk [vmem:[%s872 + $0x80] sm:$0xff] %vm726, %v848
      %882 = vst.msk [vmem:[%s872 + $0x88] sm:$0xff] %vm726, %v849
      %883 = vst.msk [vmem:[%s872 + $0xa0] sm:$0xff] %vm726, %v850
      %884 = vst.msk [vmem:[%s872 + $0xa8] sm:$0xff] %vm726, %v851
      %885 = vst.msk [vmem:[%s872 + $0xc0] sm:$0xff] %vm726, %v852
      %886 = vst.msk [vmem:[%s872 + $0xc8] sm:$0xff] %vm726, %v853
      %887 = vst.msk [vmem:[%s872 + $0xe0] sm:$0xff] %vm726, %v854
      %888 = vst.msk [vmem:[%s872 + $0xe8] sm:$0xff] %vm726, %v855
      %s889 = smul.u32 8, %s21
      %p890 = scmp.lt.s32.totalorder %s20, 1
      %s891 = scalar_select %p890, %s20, 1
      %p892 = scmp.lt.s32.totalorder %s889, 15
      %s893 = scalar_select %p892, %s889, 15
      %s894 = smul.addr %s893, 4
      %s895 = smul.addr %s891, 64
      %s896 = sadd.s32 %s894, %s895
      %s897 = smul.addr %s896, 8
      %s898 = scalar_lea.vmem %s5, %s897
      // Predicated region
      $region41: #{decode_conv_block.1} parent=39 // pred_check
        %p899 = pneg %p175
      $region42: #{decode_conv_block.1} parent=39 // pred_check_branch
        %901 = sbr.rel (%p899) target = $region44
      $region43: #{decode_conv_block.1} parent=39 // pred_region
        %s902 = smul.u32 8, %s21
      $region44: #{decode_conv_block.1} parent=39 // pred_fallthru
        _
    $region40: #{decode_conv_block.1} parent=5 // pred_fallthru
      _
    %p903 = scmp.le.s32.totalorder 2, %s11
    // Predicated region
    $region45: #{decode_conv_block.1} parent=5 // pred_check
      %p904 = pneg %p903
    $region46: #{decode_conv_block.1} parent=5 // pred_check_branch
      %906 = sbr.rel (%p904) target = $region48
    $region47: #{decode_conv_block.1} parent=5 // pred_region
      %s907 = ssub.s32 %s11, 2
      // Predicated region
      $region49: #{decode_conv_block.1} parent=47 // pred_check
        %p908 = pneg %p181
      $region50: #{decode_conv_block.1} parent=47 // pred_check_branch
        %910 = sbr.rel (%p908) target = $region52
      $region51: #{decode_conv_block.1} parent=47 // pred_region
        %s911 = smul.u32 8, %s23
        %p912 = scmp.lt.s32.totalorder %s22, 1
        %s913 = scalar_select %p912, %s22, 1
        %p914 = scmp.lt.s32.totalorder %s911, 15
        %s915 = scalar_select %p914, %s911, 15
        %s916 = smul.addr %s915, 4
        %s917 = smul.addr %s913, 64
        %s918 = sadd.s32 %s916, %s917
        %s919 = smul.addr %s918, 8
        %s920 = scalar_lea.vmem %s5, %s919
      $region52: #{decode_conv_block.1} parent=47 // pred_fallthru
        _
    $region48: #{decode_conv_block.1} parent=5 // pred_fallthru
      _
  $region6: #{decode_conv_block.1} parent=0 // loop_footer
    %s15 = sadd.s32 1, %s11
  $region7: #{decode_conv_block.1} parent=0 // loop_footer_branch
    %10 = sbr.rel target = $region3
  $region8: #{decode_conv_block.1} parent=0 // loop_exit
    _

</llo_original>
